<compile_context>
chip_gen: v5e
topology: v5e:2x2
jax: 0.10.0
libtpu: 0.0.40
codegen_flags: <defaults>
</compile_context>

<pallas_src>
import functools

import jax
import jax.numpy as jnp
from jax import lax
from jax.experimental import pallas as pl
from jax.experimental.pallas import tpu as pltpu


def _clip_loss_kernel(temp_ref, vis_ref, txt_ref, txt_diag_ref, out_ref,
                      txt_n_ref, txt_colsum_ref, m_c_ref, l_c_ref,
                      lse_r_acc, diag_acc, total_acc, *,
                      alpha_i2t, label_smoothing, batch_size, matmul_dtype):
    """One row tile of the CLIP contrastive loss.

    temp_ref:      (1, 1) f32, SMEM              temperature
    vis_ref:       (tm, E) VMEM                  image row tile
    txt_ref:       (bs, E) VMEM                  full text block (resident)
    txt_diag_ref:  (tm, E) VMEM                  text rows matching this tile
    out_ref:       (1, 1) f32 VMEM               scalar loss (written last step)
    scratch:       normalized text, its col-sum, running column max/sum,
                   and three (1,1) scalar accumulators.
    """
    i = pl.program_id(0)
    n_tiles = pl.num_programs(0)

    inv_temp = 1.0 / temp_ref[0, 0]
    eps_sq = 1e-24  # (F.normalize eps = 1e-12) ** 2

    def _inv_norm(x):
        # 1 / max(||x||_2, 1e-12) per row.  rsqrt on the EUP (free-ish slot)
        # + one Newton-Raphson step so accuracy is f32-level regardless of the
        # EUP approximation.
        s = jnp.maximum(jnp.sum(x * x, axis=-1, keepdims=True), eps_sq)
        y = lax.rsqrt(s)
        return y * (1.5 - 0.5 * s * y * y)

    # ---- one-time init (first grid step): normalize text ONCE, zero accums.
    @pl.when(i == 0)
    def _init():
        txt = txt_ref[...].astype(jnp.float32)
        txt_n = txt * _inv_norm(txt)
        txt_n_ref[...] = txt_n.astype(matmul_dtype)          # MXU operand
        txt_colsum_ref[...] = jnp.sum(txt_n, axis=0, keepdims=True)
        m_c_ref[...] = jnp.full_like(m_c_ref, -jnp.inf)
        l_c_ref[...] = jnp.zeros_like(l_c_ref)
        lse_r_acc[...] = jnp.zeros_like(lse_r_acc)
        diag_acc[...] = jnp.zeros_like(diag_acc)
        total_acc[...] = jnp.zeros_like(total_acc)

    # ---- image row tile, normalized with 1/temperature folded in (O(tm*E)).
    vis = vis_ref[...].astype(jnp.float32)
    vis_s = vis * (inv_temp * _inv_norm(vis))                  # (tm, E) f32

    # ---- logits block (tm, bs) = vis_s @ txt_n^T on the MXU.  Contract the
    # embedding axis of both operands (no .T materialized); operands in
    # matmul_dtype (bf16 default), f32 accumulation.
    block = lax.dot_general(
        vis_s.astype(matmul_dtype), txt_n_ref[...],
        dimension_numbers=(((1,), (1,)), ((), ())),
        preferred_element_type=jnp.float32)                    # (tm, bs) f32

    # ---- i2t: exact row log-sum-exp (each tile row holds the complete row).
    m_r = jnp.max(block, axis=1, keepdims=True)                # (tm, 1)
    lse_r = m_r + jnp.log(jnp.sum(jnp.exp(block - m_r), axis=1, keepdims=True))
    lse_r_acc[...] += jnp.sum(lse_r, axis=0, keepdims=True)    # (1, 1)

    # ---- t2i: flash-style online column log-sum-exp across row tiles.
    m_new = jnp.maximum(m_c_ref[...], jnp.max(block, axis=0, keepdims=True))
    l_c_ref[...] = (l_c_ref[...] * jnp.exp(m_c_ref[...] - m_new)
                    + jnp.sum(jnp.exp(block - m_new), axis=0, keepdims=True))
    m_c_ref[...] = m_new

    # ---- diagonal logits of this tile: row-matched <img_i, txt_i> in f32.
    # O(tm*E); no iota / (bs,bs) mask / gather.
    txt_d = txt_diag_ref[...].astype(jnp.float32)
    txt_d = txt_d * _inv_norm(txt_d)
    diag_p = jnp.sum(vis_s * txt_d, axis=1, keepdims=True)     # (tm, 1)
    diag_acc[...] += jnp.sum(diag_p, axis=0, keepdims=True)

    # ---- total logits sum for this tile: <row-sum(vis_s), col-sum(txt_n)>,
    # O(tm*E + E) instead of an O(tm*bs) full-block reduction.
    v_sum = jnp.sum(vis_s, axis=0, keepdims=True)              # (1, E)
    total_acc[...] += jnp.sum(v_sum * txt_colsum_ref[...], axis=1, keepdims=True)

    # ---- finalize on the last tile.
    #   CE(label_smoothing) per row = lse - (1-ls)*logit_diag - (ls/C)*sum(logits)
    #   t2i is the column softmax of the same logits, so it reuses diag/total.
    @pl.when(i == n_tiles - 1)
    def _finalize():
        ls = label_smoothing
        c = float(batch_size)
        lse_c_sum = jnp.sum(m_c_ref[...] + jnp.log(l_c_ref[...]),
                            axis=1, keepdims=True)             # (1, 1)
        smooth = (1.0 - ls) * diag_acc[...] + (ls / c) * total_acc[...]
        loss_i2t = (lse_r_acc[...] - smooth) / c
        loss_t2i = (lse_c_sum - smooth) / c
        out_ref[...] = alpha_i2t * loss_i2t + (1.0 - alpha_i2t) * loss_t2i


def _pick_row_tile(batch_size):
    for t in (512, 256, 128):
        if batch_size % t == 0:
            return t
    return batch_size  # small / odd batch: single tile


def clip_loss(embed_vis, embed_txt, temperature=0.07, alpha_i2t=0.5,
              label_smoothing=0.1, matmul_dtype=jnp.bfloat16, row_tile=None):
    """embed_vis, embed_txt: [bs, E] (any float dtype). Returns scalar loss_itc."""
    assert embed_vis.ndim == 2 and embed_vis.shape == embed_txt.shape
    bs, emb = embed_vis.shape
    tm = _pick_row_tile(bs) if row_tile is None else int(row_tile)
    assert bs % tm == 0 and (tm == bs or tm % 8 == 0), (bs, tm)
    n_tiles = bs // tm

    temp = jnp.asarray(temperature, jnp.float32).reshape(1, 1)

    kernel = functools.partial(
        _clip_loss_kernel,
        alpha_i2t=float(alpha_i2t),
        label_smoothing=float(label_smoothing),
        batch_size=bs,
        matmul_dtype=matmul_dtype)

    in_itemsize = jnp.dtype(embed_vis.dtype).itemsize
    mm_itemsize = jnp.dtype(matmul_dtype).itemsize
    # Working-set estimate: resident text block (+double buffer), normalized
    # text scratch, vis / txt-diag tiles, logits block + softmax temporaries,
    # column stats.  Clamp to [32 MiB, 96 MiB] (96 MiB only matters on
    # 128 MiB-VMEM parts; a working set above physical VMEM fails regardless).
    est_vmem = (2 * bs * emb * in_itemsize
                + bs * emb * mm_itemsize
                + 4 * tm * emb * in_itemsize
                + 6 * tm * bs * 4
                + (2 * bs + 2 * emb + 64) * 4)
    vmem_limit = int(min(max(2 * est_vmem, 32 * 1024 * 1024), 96 * 1024 * 1024))

    cost = pl.CostEstimate(
        flops=2 * bs * bs * emb + 12 * bs * bs + 8 * bs * emb,
        transcendentals=2 * bs * bs + 4 * bs,
        bytes_accessed=3 * bs * emb * in_itemsize + 8)

    grid_spec = pltpu.PrefetchScalarGridSpec(
        num_scalar_prefetch=0,
        grid=(n_tiles,),
        in_specs=[
            pl.BlockSpec(memory_space=pltpu.MemorySpace.SMEM),   # temperature
            pl.BlockSpec((tm, emb), lambda i: (i, 0)),           # image row tile
            pl.BlockSpec((bs, emb), lambda i: (0, 0)),           # full text (resident)
            pl.BlockSpec((tm, emb), lambda i: (i, 0)),           # text rows of this tile
        ],
        out_specs=pl.BlockSpec((1, 1), lambda i: (0, 0)),
        scratch_shapes=[
            pltpu.VMEM((bs, emb), matmul_dtype),   # normalized text (MXU operand)
            pltpu.VMEM((1, emb), jnp.float32),     # column-sum of normalized text
            pltpu.VMEM((1, bs), jnp.float32),      # running column max   (t2i)
            pltpu.VMEM((1, bs), jnp.float32),      # running column sumexp(t2i)
            pltpu.VMEM((1, 1), jnp.float32),       # sum of row LSEs      (i2t)
            pltpu.VMEM((1, 1), jnp.float32),       # sum of diagonal logits
            pltpu.VMEM((1, 1), jnp.float32),       # sum of all logits
        ])

    loss = pl.pallas_call(
        kernel,
        grid_spec=grid_spec,
        out_shape=jax.ShapeDtypeStruct((1, 1), jnp.float32),
        compiler_params=pltpu.CompilerParams(
            # Row axis carries the online column accumulators -> sequential.
            dimension_semantics=("arbitrary",),
            vmem_limit_bytes=vmem_limit),
        cost_estimate=cost,
    )(temp, embed_vis, embed_txt, embed_txt)
    return loss[0, 0]


def _clip_loss_ref(embed_vis, embed_txt, temperature=0.07, alpha_i2t=0.5,
                   label_smoothing=0.1):
    """Pure-JAX f32 reference matching the PyTorch module."""
    eps = 1e-12
    vn = embed_vis / jnp.maximum(
        jnp.linalg.norm(embed_vis, axis=-1, keepdims=True), eps)
    tn = embed_txt / jnp.maximum(
        jnp.linalg.norm(embed_txt, axis=-1, keepdims=True), eps)
    logits_i2t = (vn @ tn.T) / temperature
    logits_t2i = (tn @ vn.T) / temperature
    bs = embed_vis.shape[0]
    labels = jnp.arange(bs)

    def ce_ls(logits):
        logp = jax.nn.log_softmax(logits, axis=-1)
        nll = -logp[jnp.arange(bs), labels]
        smooth = -jnp.mean(logp, axis=-1)
        per = (1.0 - label_smoothing) * nll + label_smoothing * smooth
        return jnp.mean(per)

    return alpha_i2t * ce_ls(logits_i2t) + (1.0 - alpha_i2t) * ce_ls(logits_t2i)


if __name__ == "__main__":
    key = jax.random.PRNGKey(0)
    k1, k2, k3, k4 = jax.random.split(key, 4)

    # Case 1: tiny single-tile problem (shapes consistent with the module).
    bs, hidden = 8, 32
    ev = jax.random.normal(k1, (bs, hidden), dtype=jnp.float32)
    et = jax.random.normal(k2, (bs, hidden), dtype=jnp.float32)
    ref = _clip_loss_ref(ev, et, 0.07, 0.5, 0.1)

    # f32-MXU path: tight numerical check of the kernel math.
    loss_f32 = clip_loss(ev, et, temperature=0.07, alpha_i2t=0.5,
                         matmul_dtype=jnp.float32)
    jax.block_until_ready(loss_f32)
    assert abs(float(loss_f32) - float(ref)) < 5e-4, (float(loss_f32), float(ref))

    # Default bf16-MXU path: error bounded by bf16 operand rounding of the
    # 1/T-scaled logits (~|logit| * 2^-8 at E=32); looser check, correctness
    # is already established by the f32 check above.
    loss_bf16 = clip_loss(ev, et, temperature=0.07, alpha_i2t=0.5)
    jax.block_until_ready(loss_bf16)
    assert abs(float(loss_bf16) - float(ref)) < 5e-2, (float(loss_bf16), float(ref))

    # Case 2: multi-tile grid (exercises the online column-LSE accumulation).
    bs2, hidden2 = 64, 128
    ev2 = jax.random.normal(k3, (bs2, hidden2), dtype=jnp.float32)
    et2 = jax.random.normal(k4, (bs2, hidden2), dtype=jnp.float32)
    ref2 = _clip_loss_ref(ev2, et2, 0.05, 0.3, 0.1)

    loss2_f32 = clip_loss(ev2, et2, temperature=0.05, alpha_i2t=0.3,
                          matmul_dtype=jnp.float32, row_tile=16)
    jax.block_until_ready(loss2_f32)
    assert abs(float(loss2_f32) - float(ref2)) < 5e-4, (float(loss2_f32), float(ref2))

    loss2_bf16 = clip_loss(ev2, et2, temperature=0.05, alpha_i2t=0.3, row_tile=16)
    jax.block_until_ready(loss2_bf16)
    assert abs(float(loss2_bf16) - float(ref2)) < 5e-2, (float(loss2_bf16), float(ref2))

    print("KERNEL_OK")
</pallas_src>

<mosaic_0001>
module attributes {stable_mosaic.version = 11 : i64} {
  func.func @_clip_loss_kernel(%arg0: i32, %arg1: memref<1x1xf32, #tpu.memory_space<smem>>, %arg2: memref<8x32xf32, #tpu.memory_space<vmem>>, %arg3: memref<8x32xf32, #tpu.memory_space<vmem>>, %arg4: memref<8x32xf32, #tpu.memory_space<vmem>>, %arg5: memref<1x1xf32, #tpu.memory_space<vmem>>, %arg6: memref<8x32xf32, #tpu.memory_space<vmem>>, %arg7: memref<1x32xf32, #tpu.memory_space<vmem>>, %arg8: memref<1x8xf32, #tpu.memory_space<vmem>>, %arg9: memref<1x8xf32, #tpu.memory_space<vmem>>, %arg10: memref<1x1xf32, #tpu.memory_space<vmem>>, %arg11: memref<1x1xf32, #tpu.memory_space<vmem>>, %arg12: memref<1x1xf32, #tpu.memory_space<vmem>>) attributes {dimension_semantics = [#tpu.dimension_semantics<arbitrary>], iteration_bounds = array<i64: 1>, scalar_prefetch = 0 : i64, scratch_operands = 7 : i64, tpu.core_type = #tpu.core_type<tc>, window_params = [{transform_indices = @transform_0, window_bounds = array<i64: 1, 1>}, {transform_indices = @transform_1, window_bounds = array<i64: 8, 32>}, {pipeline_mode = #tpu.pipeline_mode<synchronous>, transform_indices = @transform_2, window_bounds = array<i64: 8, 32>}, {transform_indices = @transform_3, window_bounds = array<i64: 8, 32>}, {pipeline_mode = #tpu.pipeline_mode<synchronous>, transform_indices = @transform_4, window_bounds = array<i64: 1, 1>}]} {
    %c0 = arith.constant 0 : index
    %c0_0 = arith.constant 0 : index
    %0 = memref.load %arg1[%c0, %c0_0] : memref<1x1xf32, #tpu.memory_space<smem>>
    %cst = arith.constant 1.000000e+00 : f32
    %1 = arith.divf %cst, %0 : f32
    %c0_i32 = arith.constant 0 : i32
    %2 = arith.cmpi eq, %arg0, %c0_i32 : i32
    %3 = arith.extui %2 : i1 to i32
    %c0_i32_1 = arith.constant 0 : i32
    %4 = arith.cmpi ne, %3, %c0_i32_1 : i32
    scf.if %4 {
      %c0_52 = arith.constant 0 : index
      %c0_53 = arith.constant 0 : index
      %92 = vector.load %arg3[%c0_52, %c0_53] : memref<8x32xf32, #tpu.memory_space<vmem>>, vector<8x32xf32>
      %93 = arith.mulf %92, %92 : vector<8x32xf32>
      %cst_54 = arith.constant dense<0.000000e+00> : vector<8xf32>
      %94 = vector.multi_reduction <add>, %93, %cst_54 [1] : vector<8x32xf32> to vector<8xf32>
      %95 = vector.shape_cast %94 : vector<8xf32> to vector<8x1xf32>
      %cst_55 = arith.constant 1.000000e-24 : f32
      %96 = vector.broadcast %cst_55 : f32 to vector<8x1xf32>
      %97 = arith.maximumf %95, %96 : vector<8x1xf32>
      %98 = math.rsqrt %97 : vector<8x1xf32>
      %cst_56 = arith.constant 5.000000e-01 : f32
      %99 = vector.broadcast %cst_56 : f32 to vector<8x1xf32>
      %100 = arith.mulf %99, %97 : vector<8x1xf32>
      %101 = arith.mulf %100, %98 : vector<8x1xf32>
      %102 = arith.mulf %101, %98 : vector<8x1xf32>
      %cst_57 = arith.constant 1.500000e+00 : f32
      %103 = vector.broadcast %cst_57 : f32 to vector<8x1xf32>
      %104 = arith.subf %103, %102 : vector<8x1xf32>
      %105 = arith.mulf %98, %104 : vector<8x1xf32>
      %106 = vector.broadcast %105 : vector<8x1xf32> to vector<8x32xf32>
      %107 = arith.mulf %92, %106 : vector<8x32xf32>
      %c0_58 = arith.constant 0 : index
      %c0_59 = arith.constant 0 : index
      %108 = vector.load %arg6[%c0_58, %c0_59] : memref<8x32xf32, #tpu.memory_space<vmem>>, vector<8x32xf32>
      tpu.vector_store %arg6[%c0_58, %c0_59], %107 {strides = array<i32>} : memref<8x32xf32, #tpu.memory_space<vmem>>, vector<8x32xf32>,
      %cst_60 = arith.constant dense<0.000000e+00> : vector<32xf32>
      %109 = vector.multi_reduction <add>, %107, %cst_60 [0] : vector<8x32xf32> to vector<32xf32>
      %110 = vector.shape_cast %109 : vector<32xf32> to vector<1x32xf32>
      %c0_61 = arith.constant 0 : index
      %c0_62 = arith.constant 0 : index
      %111 = vector.load %arg7[%c0_61, %c0_62] : memref<1x32xf32, #tpu.memory_space<vmem>>, vector<1x32xf32>
      tpu.vector_store %arg7[%c0_61, %c0_62], %110 {strides = array<i32>} : memref<1x32xf32, #tpu.memory_space<vmem>>, vector<1x32xf32>,
      %cst_63 = arith.constant 0xFF800000 : f32
      %112 = vector.broadcast %cst_63 : f32 to vector<1x8xf32>
      %c0_64 = arith.constant 0 : index
      %c0_65 = arith.constant 0 : index
      %113 = vector.load %arg8[%c0_64, %c0_65] : memref<1x8xf32, #tpu.memory_space<vmem>>, vector<1x8xf32>
      tpu.vector_store %arg8[%c0_64, %c0_65], %112 {strides = array<i32>} : memref<1x8xf32, #tpu.memory_space<vmem>>, vector<1x8xf32>,
      %cst_66 = arith.constant 0.000000e+00 : f32
      %114 = vector.broadcast %cst_66 : f32 to vector<1x8xf32>
      %c0_67 = arith.constant 0 : index
      %c0_68 = arith.constant 0 : index
      %115 = vector.load %arg9[%c0_67, %c0_68] : memref<1x8xf32, #tpu.memory_space<vmem>>, vector<1x8xf32>
      tpu.vector_store %arg9[%c0_67, %c0_68], %114 {strides = array<i32>} : memref<1x8xf32, #tpu.memory_space<vmem>>, vector<1x8xf32>,
      %cst_69 = arith.constant 0.000000e+00 : f32
      %116 = vector.broadcast %cst_69 : f32 to vector<1x1xf32>
      %c0_70 = arith.constant 0 : index
      %c0_71 = arith.constant 0 : index
      %117 = vector.load %arg10[%c0_70, %c0_71] : memref<1x1xf32, #tpu.memory_space<vmem>>, vector<1x1xf32>
      tpu.vector_store %arg10[%c0_70, %c0_71], %116 {strides = array<i32>} : memref<1x1xf32, #tpu.memory_space<vmem>>, vector<1x1xf32>,
      %cst_72 = arith.constant 0.000000e+00 : f32
      %118 = vector.broadcast %cst_72 : f32 to vector<1x1xf32>
      %c0_73 = arith.constant 0 : index
      %c0_74 = arith.constant 0 : index
      %119 = vector.load %arg11[%c0_73, %c0_74] : memref<1x1xf32, #tpu.memory_space<vmem>>, vector<1x1xf32>
      tpu.vector_store %arg11[%c0_73, %c0_74], %118 {strides = array<i32>} : memref<1x1xf32, #tpu.memory_space<vmem>>, vector<1x1xf32>,
      %cst_75 = arith.constant 0.000000e+00 : f32
      %120 = vector.broadcast %cst_75 : f32 to vector<1x1xf32>
      %c0_76 = arith.constant 0 : index
      %c0_77 = arith.constant 0 : index
      %121 = vector.load %arg12[%c0_76, %c0_77] : memref<1x1xf32, #tpu.memory_space<vmem>>, vector<1x1xf32>
      tpu.vector_store %arg12[%c0_76, %c0_77], %120 {strides = array<i32>} : memref<1x1xf32, #tpu.memory_space<vmem>>, vector<1x1xf32>,
    } else {
    }
    %c0_2 = arith.constant 0 : index
    %c0_3 = arith.constant 0 : index
    %5 = vector.load %arg2[%c0_2, %c0_3] : memref<8x32xf32, #tpu.memory_space<vmem>>, vector<8x32xf32>
    %6 = arith.mulf %5, %5 : vector<8x32xf32>
    %cst_4 = arith.constant dense<0.000000e+00> : vector<8xf32>
    %7 = vector.multi_reduction <add>, %6, %cst_4 [1] : vector<8x32xf32> to vector<8xf32>
    %8 = vector.shape_cast %7 : vector<8xf32> to vector<8x1xf32>
    %cst_5 = arith.constant 1.000000e-24 : f32
    %9 = vector.broadcast %cst_5 : f32 to vector<8x1xf32>
    %10 = arith.maximumf %8, %9 : vector<8x1xf32>
    %11 = math.rsqrt %10 : vector<8x1xf32>
    %cst_6 = arith.constant 5.000000e-01 : f32
    %12 = vector.broadcast %cst_6 : f32 to vector<8x1xf32>
    %13 = arith.mulf %12, %10 : vector<8x1xf32>
    %14 = arith.mulf %13, %11 : vector<8x1xf32>
    %15 = arith.mulf %14, %11 : vector<8x1xf32>
    %cst_7 = arith.constant 1.500000e+00 : f32
    %16 = vector.broadcast %cst_7 : f32 to vector<8x1xf32>
    %17 = arith.subf %16, %15 : vector<8x1xf32>
    %18 = arith.mulf %11, %17 : vector<8x1xf32>
    %19 = vector.broadcast %1 : f32 to vector<8x1xf32>
    %20 = arith.mulf %19, %18 : vector<8x1xf32>
    %21 = vector.broadcast %20 : vector<8x1xf32> to vector<8x32xf32>
    %22 = arith.mulf %5, %21 : vector<8x32xf32>
    %c0_8 = arith.constant 0 : index
    %c0_9 = arith.constant 0 : index
    %23 = vector.load %arg6[%c0_8, %c0_9] : memref<8x32xf32, #tpu.memory_space<vmem>>, vector<8x32xf32>
    %cst_10 = arith.constant dense<0.000000e+00> : vector<8x8xf32>
    %24 = tpu.matmul %22, %23, %cst_10 {dimension_numbers = #tpu.dot_dimension_numbers<[1], [1], [0], [0], [0, 0, 1, 0], [], []>} : vector<8x32xf32>, vector<8x32xf32>, vector<8x8xf32> -> vector<8x8xf32>
    %cst_11 = arith.constant dense<0xFF800000> : vector<8xf32>
    %25 = vector.multi_reduction <maximumf>, %24, %cst_11 [1] : vector<8x8xf32> to vector<8xf32>
    %26 = vector.shape_cast %25 : vector<8xf32> to vector<8x1xf32>
    %27 = vector.broadcast %26 : vector<8x1xf32> to vector<8x8xf32>
    %28 = arith.subf %24, %27 : vector<8x8xf32>
    %29 = math.exp %28 : vector<8x8xf32>
    %cst_12 = arith.constant dense<0.000000e+00> : vector<8xf32>
    %30 = vector.multi_reduction <add>, %29, %cst_12 [1] : vector<8x8xf32> to vector<8xf32>
    %31 = vector.shape_cast %30 : vector<8xf32> to vector<8x1xf32>
    %32 = math.log %31 : vector<8x1xf32>
    %33 = arith.addf %26, %32 : vector<8x1xf32>
    %c0_13 = arith.constant 0 : index
    %c0_14 = arith.constant 0 : index
    %34 = vector.load %arg10[%c0_13, %c0_14] : memref<1x1xf32, #tpu.memory_space<vmem>>, vector<1x1xf32>
    %cst_15 = arith.constant dense<0.000000e+00> : vector<1xf32>
    %35 = vector.multi_reduction <add>, %33, %cst_15 [0] : vector<8x1xf32> to vector<1xf32>
    %36 = vector.shape_cast %35 : vector<1xf32> to vector<1x1xf32>
    %37 = arith.addf %34, %36 : vector<1x1xf32>
    %c0_16 = arith.constant 0 : index
    %c0_17 = arith.constant 0 : index
    %38 = vector.load %arg10[%c0_16, %c0_17] : memref<1x1xf32, #tpu.memory_space<vmem>>, vector<1x1xf32>
    tpu.vector_store %arg10[%c0_16, %c0_17], %37 {strides = array<i32>} : memref<1x1xf32, #tpu.memory_space<vmem>>, vector<1x1xf32>,
    %c0_18 = arith.constant 0 : index
    %c0_19 = arith.constant 0 : index
    %39 = vector.load %arg8[%c0_18, %c0_19] : memref<1x8xf32, #tpu.memory_space<vmem>>, vector<1x8xf32>
    %cst_20 = arith.constant dense<0xFF800000> : vector<8xf32>
    %40 = vector.multi_reduction <maximumf>, %24, %cst_20 [0] : vector<8x8xf32> to vector<8xf32>
    %41 = vector.shape_cast %40 : vector<8xf32> to vector<1x8xf32>
    %42 = arith.maximumf %39, %41 : vector<1x8xf32>
    %c0_21 = arith.constant 0 : index
    %c0_22 = arith.constant 0 : index
    %43 = vector.load %arg9[%c0_21, %c0_22] : memref<1x8xf32, #tpu.memory_space<vmem>>, vector<1x8xf32>
    %c0_23 = arith.constant 0 : index
    %c0_24 = arith.constant 0 : index
    %44 = vector.load %arg8[%c0_23, %c0_24] : memref<1x8xf32, #tpu.memory_space<vmem>>, vector<1x8xf32>
    %45 = arith.subf %44, %42 : vector<1x8xf32>
    %46 = math.exp %45 : vector<1x8xf32>
    %47 = arith.mulf %43, %46 : vector<1x8xf32>
    %48 = vector.broadcast %42 : vector<1x8xf32> to vector<8x8xf32>
    %49 = arith.subf %24, %48 : vector<8x8xf32>
    %50 = math.exp %49 : vector<8x8xf32>
    %cst_25 = arith.constant dense<0.000000e+00> : vector<8xf32>
    %51 = vector.multi_reduction <add>, %50, %cst_25 [0] : vector<8x8xf32> to vector<8xf32>
    %52 = vector.shape_cast %51 : vector<8xf32> to vector<1x8xf32>
    %53 = arith.addf %47, %52 : vector<1x8xf32>
    %c0_26 = arith.constant 0 : index
    %c0_27 = arith.constant 0 : index
    %54 = vector.load %arg9[%c0_26, %c0_27] : memref<1x8xf32, #tpu.memory_space<vmem>>, vector<1x8xf32>
    tpu.vector_store %arg9[%c0_26, %c0_27], %53 {strides = array<i32>} : memref<1x8xf32, #tpu.memory_space<vmem>>, vector<1x8xf32>,
    %c0_28 = arith.constant 0 : index
    %c0_29 = arith.constant 0 : index
    %55 = vector.load %arg8[%c0_28, %c0_29] : memref<1x8xf32, #tpu.memory_space<vmem>>, vector<1x8xf32>
    tpu.vector_store %arg8[%c0_28, %c0_29], %42 {strides = array<i32>} : memref<1x8xf32, #tpu.memory_space<vmem>>, vector<1x8xf32>,
    %c0_30 = arith.constant 0 : index
    %c0_31 = arith.constant 0 : index
    %56 = vector.load %arg4[%c0_30, %c0_31] : memref<8x32xf32, #tpu.memory_space<vmem>>, vector<8x32xf32>
    %57 = arith.mulf %56, %56 : vector<8x32xf32>
    %cst_32 = arith.constant dense<0.000000e+00> : vector<8xf32>
    %58 = vector.multi_reduction <add>, %57, %cst_32 [1] : vector<8x32xf32> to vector<8xf32>
    %59 = vector.shape_cast %58 : vector<8xf32> to vector<8x1xf32>
    %cst_33 = arith.constant 1.000000e-24 : f32
    %60 = vector.broadcast %cst_33 : f32 to vector<8x1xf32>
    %61 = arith.maximumf %59, %60 : vector<8x1xf32>
    %62 = math.rsqrt %61 : vector<8x1xf32>
    %cst_34 = arith.constant 5.000000e-01 : f32
    %63 = vector.broadcast %cst_34 : f32 to vector<8x1xf32>
    %64 = arith.mulf %63, %61 : vector<8x1xf32>
    %65 = arith.mulf %64, %62 : vector<8x1xf32>
    %66 = arith.mulf %65, %62 : vector<8x1xf32>
    %cst_35 = arith.constant 1.500000e+00 : f32
    %67 = vector.broadcast %cst_35 : f32 to vector<8x1xf32>
    %68 = arith.subf %67, %66 : vector<8x1xf32>
    %69 = arith.mulf %62, %68 : vector<8x1xf32>
    %70 = vector.broadcast %69 : vector<8x1xf32> to vector<8x32xf32>
    %71 = arith.mulf %56, %70 : vector<8x32xf32>
    %72 = arith.mulf %22, %71 : vector<8x32xf32>
    %cst_36 = arith.constant dense<0.000000e+00> : vector<8xf32>
    %73 = vector.multi_reduction <add>, %72, %cst_36 [1] : vector<8x32xf32> to vector<8xf32>
    %74 = vector.shape_cast %73 : vector<8xf32> to vector<8x1xf32>
    %c0_37 = arith.constant 0 : index
    %c0_38 = arith.constant 0 : index
    %75 = vector.load %arg11[%c0_37, %c0_38] : memref<1x1xf32, #tpu.memory_space<vmem>>, vector<1x1xf32>
    %cst_39 = arith.constant dense<0.000000e+00> : vector<1xf32>
    %76 = vector.multi_reduction <add>, %74, %cst_39 [0] : vector<8x1xf32> to vector<1xf32>
    %77 = vector.shape_cast %76 : vector<1xf32> to vector<1x1xf32>
    %78 = arith.addf %75, %77 : vector<1x1xf32>
    %c0_40 = arith.constant 0 : index
    %c0_41 = arith.constant 0 : index
    %79 = vector.load %arg11[%c0_40, %c0_41] : memref<1x1xf32, #tpu.memory_space<vmem>>, vector<1x1xf32>
    tpu.vector_store %arg11[%c0_40, %c0_41], %78 {strides = array<i32>} : memref<1x1xf32, #tpu.memory_space<vmem>>, vector<1x1xf32>,
    %cst_42 = arith.constant dense<0.000000e+00> : vector<32xf32>
    %80 = vector.multi_reduction <add>, %22, %cst_42 [0] : vector<8x32xf32> to vector<32xf32>
    %81 = vector.shape_cast %80 : vector<32xf32> to vector<1x32xf32>
    %c0_43 = arith.constant 0 : index
    %c0_44 = arith.constant 0 : index
    %82 = vector.load %arg12[%c0_43, %c0_44] : memref<1x1xf32, #tpu.memory_space<vmem>>, vector<1x1xf32>
    %c0_45 = arith.constant 0 : index
    %c0_46 = arith.constant 0 : index
    %83 = vector.load %arg7[%c0_45, %c0_46] : memref<1x32xf32, #tpu.memory_space<vmem>>, vector<1x32xf32>
    %84 = arith.mulf %81, %83 : vector<1x32xf32>
    %cst_47 = arith.constant dense<0.000000e+00> : vector<1xf32>
    %85 = vector.multi_reduction <add>, %84, %cst_47 [1] : vector<1x32xf32> to vector<1xf32>
    %86 = vector.shape_cast %85 : vector<1xf32> to vector<1x1xf32>
    %87 = arith.addf %82, %86 : vector<1x1xf32>
    %c0_48 = arith.constant 0 : index
    %c0_49 = arith.constant 0 : index
    %88 = vector.load %arg12[%c0_48, %c0_49] : memref<1x1xf32, #tpu.memory_space<vmem>>, vector<1x1xf32>
    tpu.vector_store %arg12[%c0_48, %c0_49], %87 {strides = array<i32>} : memref<1x1xf32, #tpu.memory_space<vmem>>, vector<1x1xf32>,
    %c0_i32_50 = arith.constant 0 : i32
    %89 = arith.cmpi eq, %arg0, %c0_i32_50 : i32
    %90 = arith.extui %89 : i1 to i32
    %c0_i32_51 = arith.constant 0 : i32
    %91 = arith.cmpi ne, %90, %c0_i32_51 : i32
    scf.if %91 {
      %c0_52 = arith.constant 0 : index
      %c0_53 = arith.constant 0 : index
      %92 = vector.load %arg8[%c0_52, %c0_53] : memref<1x8xf32, #tpu.memory_space<vmem>>, vector<1x8xf32>
      %c0_54 = arith.constant 0 : index
      %c0_55 = arith.constant 0 : index
      %93 = vector.load %arg9[%c0_54, %c0_55] : memref<1x8xf32, #tpu.memory_space<vmem>>, vector<1x8xf32>
      %94 = math.log %93 : vector<1x8xf32>
      %95 = arith.addf %92, %94 : vector<1x8xf32>
      %cst_56 = arith.constant dense<0.000000e+00> : vector<1xf32>
      %96 = vector.multi_reduction <add>, %95, %cst_56 [1] : vector<1x8xf32> to vector<1xf32>
      %97 = vector.shape_cast %96 : vector<1xf32> to vector<1x1xf32>
      %c0_57 = arith.constant 0 : index
      %c0_58 = arith.constant 0 : index
      %98 = vector.load %arg11[%c0_57, %c0_58] : memref<1x1xf32, #tpu.memory_space<vmem>>, vector<1x1xf32>
      %cst_59 = arith.constant 0.899999976 : f32
      %99 = vector.broadcast %cst_59 : f32 to vector<1x1xf32>
      %100 = arith.mulf %99, %98 : vector<1x1xf32>
      %c0_60 = arith.constant 0 : index
      %c0_61 = arith.constant 0 : index
      %101 = vector.load %arg12[%c0_60, %c0_61] : memref<1x1xf32, #tpu.memory_space<vmem>>, vector<1x1xf32>
      %cst_62 = arith.constant 1.250000e-02 : f32
      %102 = vector.broadcast %cst_62 : f32 to vector<1x1xf32>
      %103 = arith.mulf %102, %101 : vector<1x1xf32>
      %104 = arith.addf %100, %103 : vector<1x1xf32>
      %c0_63 = arith.constant 0 : index
      %c0_64 = arith.constant 0 : index
      %105 = vector.load %arg10[%c0_63, %c0_64] : memref<1x1xf32, #tpu.memory_space<vmem>>, vector<1x1xf32>
      %106 = arith.subf %105, %104 : vector<1x1xf32>
      %cst_65 = arith.constant 8.000000e+00 : f32
      %107 = vector.broadcast %cst_65 : f32 to vector<1x1xf32>
      %108 = arith.divf %106, %107 : vector<1x1xf32>
      %109 = arith.subf %97, %104 : vector<1x1xf32>
      %cst_66 = arith.constant 8.000000e+00 : f32
      %110 = vector.broadcast %cst_66 : f32 to vector<1x1xf32>
      %111 = arith.divf %109, %110 : vector<1x1xf32>
      %cst_67 = arith.constant 5.000000e-01 : f32
      %112 = vector.broadcast %cst_67 : f32 to vector<1x1xf32>
      %113 = arith.mulf %112, %108 : vector<1x1xf32>
      %cst_68 = arith.constant 5.000000e-01 : f32
      %114 = vector.broadcast %cst_68 : f32 to vector<1x1xf32>
      %115 = arith.mulf %114, %111 : vector<1x1xf32>
      %116 = arith.addf %113, %115 : vector<1x1xf32>
      %c0_69 = arith.constant 0 : index
      %c0_70 = arith.constant 0 : index
      %117 = vector.load %arg5[%c0_69, %c0_70] : memref<1x1xf32, #tpu.memory_space<vmem>>, vector<1x1xf32>
      tpu.vector_store %arg5[%c0_69, %c0_70], %116 {strides = array<i32>} : memref<1x1xf32, #tpu.memory_space<vmem>>, vector<1x1xf32>,
    } else {
    }
    return
  }
  func.func @transform_0(%arg0: i32) -> (i32, i32) {
    %c0_i32 = arith.constant 0 : i32
    %c0_i32_0 = arith.constant 0 : i32
    %c0_i32_1 = arith.constant 0 : i32
    return %c0_i32, %c0_i32_0 : i32, i32
  }
  func.func @transform_1(%arg0: i32) -> (i32, i32) {
    %c0_i32 = arith.constant 0 : i32
    %c0_i32_0 = arith.constant 0 : i32
    return %arg0, %c0_i32 : i32, i32
  }
  func.func @transform_2(%arg0: i32) -> (i32, i32) {
    %c0_i32 = arith.constant 0 : i32
    %c0_i32_0 = arith.constant 0 : i32
    %c0_i32_1 = arith.constant 0 : i32
    return %c0_i32, %c0_i32_0 : i32, i32
  }
  func.func @transform_3(%arg0: i32) -> (i32, i32) {
    %c0_i32 = arith.constant 0 : i32
    %c0_i32_0 = arith.constant 0 : i32
    return %arg0, %c0_i32 : i32, i32
  }
  func.func @transform_4(%arg0: i32) -> (i32, i32) {
    %c0_i32 = arith.constant 0 : i32
    %c0_i32_0 = arith.constant 0 : i32
    %c0_i32_1 = arith.constant 0 : i32
    return %c0_i32, %c0_i32_0 : i32, i32
  }
}

</mosaic_0001>

<llo_original>
// kernel: tpu_custom_call.1
$region0: #{tpu_custom_call.1}
  #allocation0 [shape = 'u32[]', space=smem, size = 0x4, offset = 0x4, fixed_abs, tag = 'smem constant byte address 0x4 - core index']
  #allocation1 [shape = 'u32[72,128]{1,0:T(1,128)}', space=vmem, size = 0x9000, scoped, tag = 'internal scratch']
  #allocation2 [shape = 'f32[8,32]{1,0:T(8,128)}', space=vmem, size = 0x1000, scoped, tag = 'scratch operand']
  #allocation3 [shape = 'f32[1,32]{1,0:T(1,128)}', space=vmem, size = 0x200, scoped, tag = 'scratch operand']
  #allocation4 [shape = 'f32[1,8]{1,0:T(1,128)}', space=vmem, size = 0x200, scoped, tag = 'scratch operand']
  #allocation5 [shape = 'f32[1,8]{1,0:T(1,128)}', space=vmem, size = 0x200, scoped, tag = 'scratch operand']
  #allocation6 [shape = 'f32[1,1]{1,0:T(1,128)}', space=vmem, size = 0x200, scoped, tag = 'scratch operand']
  #allocation7 [shape = 'f32[1,1]{1,0:T(1,128)}', space=vmem, size = 0x200, scoped, tag = 'scratch operand']
  #allocation8 [shape = 'f32[1,1]{1,0:T(1,128)}', space=vmem, size = 0x200, scoped, tag = 'scratch operand']
  #allocation9 [shape = 'f32[1,1]{1,0:T(1,128)S(6)}', space=smem, size = 0x200, scoped, tag = 'scoped memory for tpu_custom_call.1']
  %s0 = inlined_call_operand.<no memory space> [shape: f32[1,1], index: 0, kind: input, shape index: {}]
  %s1 = inlined_call_operand.hbm [shape: f32[8,32], index: 1, kind: input, shape index: {}]
  %s2 = inlined_call_operand.hbm [shape: f32[8,32], index: 2, kind: input, shape index: {}]
  %s3 = inlined_call_operand.hbm [shape: f32[8,32], index: 3, kind: input, shape index: {}]
  %s4 = inlined_call_operand.hbm [shape: f32[1,1], index: 4, kind: output, shape index: {}]
  %s5 = sld [smem:[#allocation0]]
  $region46: #{tpu_custom_call.1} parent=0
    _
  %s7 = ssub.s32 1, %s5
  %s8 = scalar_select 0, %s7, %s5
  %9 = sst [smem:[#allocation9]] %s0
  $region1: #{tpu_custom_call.1} parent=0
    #allocation10 [shape = 'u8[4096]{0}', space=vmem, size = 0x1000, scoped, tag = 'input window, operand 1, single buffered']
    #allocation11 [shape = 's32[1]{0}', space=sflag, size = 0x4, scoped, tag = 'scoped memory for tpu_custom_call.1']
    #allocation12 [shape = 's32[1]{0}', space=sflag, size = 0x4, scoped, tag = 'scoped memory for tpu_custom_call.1']
    #allocation13 [shape = 'u8[4096]{0}', space=vmem, size = 0x1000, scoped, tag = 'input window, operand 2, single buffered']
    #allocation14 [shape = 's32[1]{0}', space=sflag, size = 0x4, scoped, tag = 'scoped memory for tpu_custom_call.1']
    #allocation15 [shape = 'u8[4096]{0}', space=vmem, size = 0x1000, scoped, tag = 'input window, operand 3, single buffered']
    #allocation16 [shape = 'u8[512]{0}', space=vmem, size = 0x400, scoped, tag = 'output window, operand 0, single buffered']
    %10 = vsyncpa [#allocation11], 0
    %11 = vsyncpa [#allocation14], 0
    %12 = vsyncpa [#allocation12], 0
    // Predicated region
    $region2: #{tpu_custom_call.1} parent=1 // pred_check
      _
    $region3: #{tpu_custom_call.1} parent=1 // pred_check_branch
      %14 = sbr.rel (0) target = $region5
    $region4: #{tpu_custom_call.1} parent=1 // pred_region
      _
    $region5: #{tpu_custom_call.1} parent=1 // pred_fallthru
      _
    // Predicated region
    $region6: #{tpu_custom_call.1} parent=1 // pred_check
      _
    $region7: #{tpu_custom_call.1} parent=1 // pred_check_branch
      %16 = sbr.rel (0) target = $region9
    $region8: #{tpu_custom_call.1} parent=1 // pred_region
      %18 = vsyncadd [#allocation11], 0
      %s20 = sshll.u32 %s1, 4
      %s21 = int_to_ptr.hbm [resolvable:$true] %s20
      %s22 = sshll.u32 [#allocation10], 4
      %s23 = int_to_ptr.vmem [resolvable:$true] %s22
      %25 = dma.hbm_to_vmem [thread:$0]  %s21, 128, %s23, [#allocation11]
    $region9: #{tpu_custom_call.1} parent=1 // pred_fallthru
      _
    // Predicated region
    $region10: #{tpu_custom_call.1} parent=1 // pred_check
      _
    $region11: #{tpu_custom_call.1} parent=1 // pred_check_branch
      %27 = sbr.rel (0) target = $region13
    $region12: #{tpu_custom_call.1} parent=1 // pred_region
      %29 = vsyncadd [#allocation14], 0
      %s31 = sshll.u32 %s2, 4
      %s32 = int_to_ptr.hbm [resolvable:$true] %s31
      %s33 = sshll.u32 [#allocation13], 4
      %s34 = int_to_ptr.vmem [resolvable:$true] %s33
      %36 = dma.hbm_to_vmem [thread:$0]  %s32, 128, %s34, [#allocation14]
    $region13: #{tpu_custom_call.1} parent=1 // pred_fallthru
      _
    // Predicated region
    $region14: #{tpu_custom_call.1} parent=1 // pred_check
      _
    $region15: #{tpu_custom_call.1} parent=1 // pred_check_branch
      %38 = sbr.rel (0) target = $region17
    $region16: #{tpu_custom_call.1} parent=1 // pred_region
      %40 = vsyncadd [#allocation14], 0
      %s42 = sshll.u32 %s3, 4
      %s43 = int_to_ptr.hbm [resolvable:$true] %s42
      %s44 = sshll.u32 [#allocation15], 4
      %s45 = int_to_ptr.vmem [resolvable:$true] %s44
      %47 = dma.hbm_to_vmem [thread:$0]  %s43, 128, %s45, [#allocation14]
    $region17: #{tpu_custom_call.1} parent=1 // pred_fallthru
      _
    // Predicated region
    $region18: #{tpu_custom_call.1} parent=1 // pred_check
      _
    $region19: #{tpu_custom_call.1} parent=1 // pred_check_branch
      %49 = sbr.rel (0) target = $region21
    $region20: #{tpu_custom_call.1} parent=1 // pred_region
      %51 = dma.done [#allocation11], 128
    $region21: #{tpu_custom_call.1} parent=1 // pred_fallthru
      _
    // Predicated region
    $region22: #{tpu_custom_call.1} parent=1 // pred_check
      _
    $region23: #{tpu_custom_call.1} parent=1 // pred_check_branch
      %53 = sbr.rel (0) target = $region25
    $region24: #{tpu_custom_call.1} parent=1 // pred_region
      %55 = dma.done [#allocation14], 128
    $region25: #{tpu_custom_call.1} parent=1 // pred_fallthru
      _
    // Predicated region
    $region26: #{tpu_custom_call.1} parent=1 // pred_check
      _
    $region27: #{tpu_custom_call.1} parent=1 // pred_check_branch
      %57 = sbr.rel (0) target = $region29
    $region28: #{tpu_custom_call.1} parent=1 // pred_region
      %59 = dma.done [#allocation14], 128
    $region29: #{tpu_custom_call.1} parent=1 // pred_fallthru
      _
    %s60 = sld [smem:[#allocation9]]
    %v61 = vstv %s60
    %v62 = vrcp.pop %v61
    %v63 = vmul.f32 %v61, %v62
    %v64 = vsub.f32 1.0, %v63
    %v65 = vmul.f32 %v62, %v64
    %v66 = vadd.f32 %v62, %v65
    %vm67 = vweird.f32 %v61
    %vm68 = vweird.f32 %v62
    %vm69 = vmor %vm67, %vm68
    %v70 = vsel %vm69, %v62, %v66
    %v71 = vand.u32 2147483647, %v61
    %vm72 = vcmp.eq.f32.partialorder %v71, 8.507059e+37
    %v73 = vand.u32 %v61, 2147483648
    %v74 = vor.u32 1.1754944e-38, %v73
    %v75 = vsel %vm72, %v74, %v70
    %s76 = vtos %v75
    %p77 = scmp.eq.s32.totalorder 0, 0
    // Predicated region
    $region30: #{tpu_custom_call.1} parent=1 // pred_check
      %p78 = pneg %p77
    $region31: #{tpu_custom_call.1} parent=1 // pred_check_branch
      %80 = sbr.rel (%p78) target = $region33
    $region32: #{tpu_custom_call.1} parent=1 // pred_region
      %v81 = vld [vmem:[#allocation13] sm:$0xff]
      %v82 = vmul.f32 %v81, %v81
      %vm83 = vcmask 261120
      %v84 = vsel %vm83, %v82, 0.0
      %85 = vadd.xlane.f32.xlu0 %v84
      %v86 = vpop.xlane.xlu0 %85
      %v87 = vmax.f32 %v86, 1e-24
      %v88 = vrsqrt.pop %v87
      %v89 = vmul.f32 %v88, %v87
      %v90 = vmul.f32 %v89, %v88
      %v91 = vmul.f32 0.5, %v90
      %v92 = vsub.f32 1.5, %v91
      %v93 = vmul.f32 %v88, %v92
      %vm94 = vweird.f32 %v87
      %vm95 = vweird.f32 %v88
      %vm96 = vmor %vm94, %vm95
      %v97 = vsel %vm96, %v88, %v93
      %v98 = vmul.f32 %v87, 0.5
      %v99 = vmul.f32 %v98, %v97
      %v100 = vmul.f32 %v99, %v97
      %v101 = vsub.f32 1.5, %v100
      %v102 = vmul.f32 %v97, %v101
      %v103 = vmul.f32 %v81, %v102
      %104 = vst.msk [vmem:[#allocation2] sm:$0xff] %vm83, %v103
      %v105 = vsel %vm83, %v103, 0.0
      %v106 = vrot.slane %v105, 4
      %v107 = vadd.f32 %v105, %v106
      %v108 = vrot.slane %v107, 2
      %v109 = vadd.f32 %v107, %v108
      %v110 = vrot.slane %v109, 1
      %v111 = vadd.f32 %v109, %v110
      %vm112 = vcmask 253952
      %113 = vst.msk [vmem:[#allocation3] sm:$0x1] %vm112, %v111
      %vm114 = vcmask 57344
      %115 = vst.msk [vmem:[#allocation4] sm:$0x1] %vm114, -inf
      %116 = vst.msk [vmem:[#allocation5] sm:$0x1] %vm114, 0.0
      %vm117 = vcmask 0
      %118 = vst.msk [vmem:[#allocation6] sm:$0x1] %vm117, 0.0
      %119 = vst.msk [vmem:[#allocation7] sm:$0x1] %vm117, 0.0
      %120 = vst.msk [vmem:[#allocation8] sm:$0x1] %vm117, 0.0
    $region33: #{tpu_custom_call.1} parent=1 // pred_fallthru
      _
    %v121 = vld [vmem:[#allocation10] sm:$0xff]
    %v122 = vmul.f32 %v121, %v121
    %vm123 = vcmask 261120
    %v124 = vsel %vm123, %v122, 0.0
    %125 = vadd.xlane.f32.xlu0 %v124
    %v126 = vpop.xlane.xlu0 %125
    %v127 = vmax.f32 %v126, 1e-24
    %v128 = vrsqrt.pop %v127
    %v129 = vmul.f32 %v128, %v127
    %v130 = vmul.f32 %v129, %v128
    %v131 = vmul.f32 0.5, %v130
    %v132 = vsub.f32 1.5, %v131
    %v133 = vmul.f32 %v128, %v132
    %vm134 = vweird.f32 %v127
    %vm135 = vweird.f32 %v128
    %vm136 = vmor %vm134, %vm135
    %v137 = vsel %vm136, %v128, %v133
    %v138 = vmul.f32 %v127, 0.5
    %v139 = vmul.f32 %v138, %v137
    %v140 = vmul.f32 %v139, %v137
    %v141 = vsub.f32 1.5, %v140
    %v142 = vmul.f32 %v137, %v141
    %v143 = vstv %s76
    %v144 = vmul.f32 %v143, %v142
    %v145 = vmul.f32 %v121, %v144
    %v146 = vld [vmem:[#allocation2] sm:$0xff]
    %v148 = vsel %vm123, %v145, 0
    %v151 = vsel %vm123, %v146, 0
    %153 = vmatpush.xpose.msra.mxu0 0.0
    %154 = vmatpush.xpose.msra.mxu0 0.0
    %155 = vmatpush.xpose.msra.mxu0 0.0
    %156 = vmatpush.xpose.msra.mxu0 0.0
    %157 = vmatpush.xpose.msra.mxu0 0.0
    %158 = vmatpush.xpose.msra.mxu0 0.0
    %159 = vmatpush.xpose.msra.mxu0 0.0
    %160 = vmatpush.xpose.msra.mxu0 0.0
    %161 = vmatpush.xpose.msra.mxu0 0.0
    %162 = vmatpush.xpose.msra.mxu0 0.0
    %163 = vmatpush.xpose.msra.mxu0 0.0
    %164 = vmatpush.xpose.msra.mxu0 0.0
    %165 = vmatpush.xpose.msra.mxu0 0.0
    %166 = vmatpush.xpose.msra.mxu0 0.0
    %167 = vmatpush.xpose.msra.mxu0 0.0
    %168 = vmatpush.xpose.msra.mxu0 %v151
    %169 = vmatmul.f32.gmra.mxu0 %v148
    %v170 = vpop.f32.mrf.mxu0
    %v171 = vadd.f32 0.0, %v170
    %172 = vdwg.mxu0
    %vm173 = vcmask 64512
    %v174 = vsel %vm173, %v171, -inf
    %175 = vmax.xlane.f32.xlu0 %v174
    %v176 = vpop.xlane.xlu0 %175
    %v177 = vsub.f32 %v171, %v176
    %v178 = vmul.f32 %v177, 1.442695
    %v179 = vpow.pop %v178
    %v180 = vsel %vm173, %v179, 0.0
    %181 = vadd.xlane.f32.xlu0 %v180
    %v182 = vpop.xlane.xlu0 %181
    %v183 = vlog2.pop %v182
    %v184 = vmul.f32 %v183, 0.6931472
    %v185 = vadd.f32 %v176, %v184
    %v186 = vld [vmem:[#allocation6] sm:$0x1]
    %v187 = vrot.slane %v185, 4
    %v188 = vadd.f32 %v185, %v187
    %v189 = vrot.slane %v188, 2
    %v190 = vadd.f32 %v188, %v189
    %v191 = vrot.slane %v190, 1
    %v192 = vadd.f32 %v190, %v191
    %v193 = vadd.f32 %v186, %v192
    %vm194 = vcmask 0
    %195 = vst.msk [vmem:[#allocation6] sm:$0x1] %vm194, %v193
    %v196 = vld [vmem:[#allocation4] sm:$0x1]
    %v197 = vrot.slane %v174, 4
    %v198 = vmax.f32 %v174, %v197
    %v199 = vrot.slane %v198, 2
    %v200 = vmax.f32 %v198, %v199
    %v201 = vrot.slane %v200, 1
    %v202 = vmax.f32 %v200, %v201
    %v203 = vmax.f32 %v196, %v202
    %v204 = vld [vmem:[#allocation5] sm:$0x1]
    %v205 = vsub.f32 %v196, %v203
    %v206 = vmul.f32 %v205, 1.442695
    %v207 = vpow.pop %v206
    %v208 = vmul.f32 %v204, %v207
    %v210 = vperm.slane %v203, 0
    %v212 = vsub.f32 %v171, %v210
    %v213 = vmul.f32 %v212, 1.442695
    %v214 = vpow.pop %v213
    %v215 = vsel %vm173, %v214, 0.0
    %v216 = vrot.slane %v215, 4
    %v217 = vadd.f32 %v215, %v216
    %v218 = vrot.slane %v217, 2
    %v219 = vadd.f32 %v217, %v218
    %v220 = vrot.slane %v219, 1
    %v221 = vadd.f32 %v219, %v220
    %v222 = vadd.f32 %v208, %v221
    %vm223 = vcmask 57344
    %224 = vst.msk [vmem:[#allocation5] sm:$0x1] %vm223, %v222
    %225 = vst.msk [vmem:[#allocation4] sm:$0x1] %vm223, %v203
    %v226 = vld [vmem:[#allocation15] sm:$0xff]
    %v227 = vmul.f32 %v226, %v226
    %v228 = vsel %vm123, %v227, 0.0
    %229 = vadd.xlane.f32.xlu0 %v228
    %v230 = vpop.xlane.xlu0 %229
    %v231 = vmax.f32 %v230, 1e-24
    %v232 = vrsqrt.pop %v231
    %v233 = vmul.f32 %v232, %v231
    %v234 = vmul.f32 %v233, %v232
    %v235 = vmul.f32 0.5, %v234
    %v236 = vsub.f32 1.5, %v235
    %v237 = vmul.f32 %v232, %v236
    %vm238 = vweird.f32 %v231
    %vm239 = vweird.f32 %v232
    %vm240 = vmor %vm238, %vm239
    %v241 = vsel %vm240, %v232, %v237
    %v242 = vmul.f32 %v231, 0.5
    %v243 = vmul.f32 %v242, %v241
    %v244 = vmul.f32 %v243, %v241
    %v245 = vsub.f32 1.5, %v244
    %v246 = vmul.f32 %v241, %v245
    %v247 = vmul.f32 %v226, %v246
    %v248 = vmul.f32 %v145, %v247
    %v249 = vsel %vm123, %v248, 0.0
    %250 = vadd.xlane.f32.xlu0 %v249
    %v251 = vpop.xlane.xlu0 %250
    %v252 = vld [vmem:[#allocation7] sm:$0x1]
    %v253 = vrot.slane %v251, 4
    %v254 = vadd.f32 %v251, %v253
    %v255 = vrot.slane %v254, 2
    %v256 = vadd.f32 %v254, %v255
    %v257 = vrot.slane %v256, 1
    %v258 = vadd.f32 %v256, %v257
    %v259 = vadd.f32 %v252, %v258
    %260 = vst.msk [vmem:[#allocation7] sm:$0x1] %vm194, %v259
    %v261 = vsel %vm123, %v145, 0.0
    %v262 = vrot.slane %v261, 4
    %v263 = vadd.f32 %v261, %v262
    %v264 = vrot.slane %v263, 2
    %v265 = vadd.f32 %v263, %v264
    %v266 = vrot.slane %v265, 1
    %v267 = vadd.f32 %v265, %v266
    %v268 = vld [vmem:[#allocation8] sm:$0x1]
    %v269 = vld [vmem:[#allocation3] sm:$0x1]
    %v270 = vmul.f32 %v267, %v269
    %vm271 = vcmask 253952
    %v272 = vsel %vm271, %v270, 0.0
    %273 = vadd.xlane.f32.xlu0 %v272
    %v274 = vpop.xlane.xlu0 %273
    %v275 = vadd.f32 %v268, %v274
    %276 = vst.msk [vmem:[#allocation8] sm:$0x1] %vm194, %v275
    // Predicated region
    $region34: #{tpu_custom_call.1} parent=1 // pred_check
      %p277 = pneg %p77
    $region35: #{tpu_custom_call.1} parent=1 // pred_check_branch
      %279 = sbr.rel (%p277) target = $region37
    $region36: #{tpu_custom_call.1} parent=1 // pred_region
      %v280 = vld [vmem:[#allocation4] sm:$0x1]
      %v281 = vld [vmem:[#allocation5] sm:$0x1]
      %v282 = vlog2.pop %v281
      %v283 = vmul.f32 %v282, 0.6931472
      %v284 = vadd.f32 %v280, %v283
      %v285 = vsel %vm223, %v284, 0.0
      %286 = vadd.xlane.f32.xlu0 %v285
      %v287 = vpop.xlane.xlu0 %286
      %v288 = vld [vmem:[#allocation7] sm:$0x1]
      %v289 = vmul.f32 %v288, 0.9
      %v290 = vld [vmem:[#allocation8] sm:$0x1]
      %v291 = vmul.f32 %v290, 0.0125
      %v292 = vadd.f32 %v289, %v291
      %v293 = vld [vmem:[#allocation6] sm:$0x1]
      %v294 = vsub.f32 %v293, %v292
      %v295 = vrcp.pop 8.0
      %v296 = vmul.f32 8.0, %v295
      %v297 = vsub.f32 1.0, %v296
      %v298 = vmul.f32 %v295, %v297
      %v299 = vadd.f32 %v295, %v298
      %vm300 = vweird.f32 %v295
      %v301 = vsel %vm300, %v295, %v299
      %v302 = vmul.f32 %v294, %v301
      %v303 = vsub.f32 %v287, %v292
      %v304 = vmul.f32 %v303, %v301
      %v305 = vmul.f32 %v302, 0.5
      %v306 = vmul.f32 %v304, 0.5
      %v307 = vadd.f32 %v305, %v306
      %308 = vst.msk [vmem:[#allocation16] sm:$0x1] %vm194, %v307
    $region37: #{tpu_custom_call.1} parent=1 // pred_fallthru
      _
    // Predicated region
    $region38: #{tpu_custom_call.1} parent=1 // pred_check
      _
    $region39: #{tpu_custom_call.1} parent=1 // pred_check_branch
      %310 = sbr.rel (0) target = $region41
    $region40: #{tpu_custom_call.1} parent=1 // pred_region
      %312 = vsyncadd [#allocation12], 0
      %s314 = sshll.u32 [#allocation16], 4
      %s315 = int_to_ptr.vmem [resolvable:$true] %s314
      %s316 = sshll.u32 %s4, 4
      %s317 = int_to_ptr.hbm [resolvable:$true] %s316
      %319 = dma.vmem_to_hbm [thread:$0]  %s315, 16, %s317, [#allocation12]
    $region41: #{tpu_custom_call.1} parent=1 // pred_fallthru
      _
    // Predicated region
    $region42: #{tpu_custom_call.1} parent=1 // pred_check
      _
    $region43: #{tpu_custom_call.1} parent=1 // pred_check_branch
      %321 = sbr.rel (0) target = $region45
    $region44: #{tpu_custom_call.1} parent=1 // pred_region
      %323 = dma.done [#allocation12], 16
    $region45: #{tpu_custom_call.1} parent=1 // pred_fallthru
      _
    %324 = vsyncpa [#allocation11], 1
    %325 = vsyncpa [#allocation14], 1
    %326 = vsyncpa [#allocation12], 1

</llo_original>
